<compile_context>
chip_gen: v7x
topology: tpu7x:2x2x1
jax: 0.10.0
libtpu: 0.0.40
codegen_flags: <defaults>
</compile_context>

<pallas_src>
import jax
import jax.numpy as jnp
from jax.experimental import pallas as pl
from jax.experimental.pallas import tpu as pltpu

NUM_CLASSES = 31


def _pick_tb(B, target=256):
    """Batch tile: whole batch if small, else a fixed slab (partial last
    block is fine: out-of-range rows are masked on writeback)."""
    return B if B <= target else target


def _pick_tk(D, target=2048):
    """Largest K-tile <= target that divides D and is a multiple of 128."""
    if D <= target:
        return D
    t = (target // 128) * 128
    while t >= 128:
        if D % t == 0:
            return t
        t -= 128
    # TODO(synk): D has no 128-multiple divisor <= target; fall back to a
    # single full-D block (may exceed scoped VMEM for pathological D).
    return D


def _classifier_kernel(x_ref, w_ref, b_ref, logits_ref, pred_ref, acc_ref):
    """Fused linear head + argmax, tiled over (batch, K).

    x_ref:      (TB, TK)          bf16
    w_ref:      (TK, NUM_CLASSES) bf16
    b_ref:      (1,  NUM_CLASSES) f32
    logits_ref: (TB, NUM_CLASSES) f32  out
    pred_ref:   (TB, 1)           int32 out
    acc_ref:    (TB, NUM_CLASSES) f32  VMEM scratch accumulator
    """
    k = pl.program_id(1)

    @pl.when(k == 0)
    def _init():
        acc_ref[...] = jnp.zeros_like(acc_ref)

    acc_ref[...] += jnp.dot(x_ref[...], w_ref[...],
                            preferred_element_type=jnp.float32)

    @pl.when(k == pl.num_programs(1) - 1)
    def _finalize():
        logits = acc_ref[...] + b_ref[...]
        logits_ref[...] = logits
        # First-occurrence argmax over the class axis, built from plain
        # max/min lane reductions (robust Mosaic lowering, stays 2-D).
        row_max = jnp.max(logits, axis=1, keepdims=True)
        col = jax.lax.broadcasted_iota(jnp.int32, logits.shape, 1)
        first_max = jnp.min(
            jnp.where(logits == row_max, col, NUM_CLASSES),
            axis=1, keepdims=True)
        pred_ref[...] = first_max.astype(jnp.int32)


def prepare_params(w, b):
    """One-time (model-init) parameter prep — outside the per-call hot path."""
    w_bf16 = jnp.asarray(w, jnp.float32).astype(jnp.bfloat16)      # (D, 31)
    b_f32 = jnp.asarray(b, jnp.float32).reshape(1, NUM_CLASSES)    # (1, 31)
    return w_bf16, b_f32


def base_model_forward(x_nchw, w_bf16, b_f32):
    """x_nchw: (B, C, H, W). Returns (logits (B, 31) f32, preds (B,) int32)."""
    B = x_nchw.shape[0]
    D = x_nchw.shape[1] * x_nchw.shape[2] * x_nchw.shape[3]
    assert w_bf16.shape == (D, NUM_CLASSES)

    x2d = x_nchw.reshape(B, D).astype(jnp.bfloat16)

    TB = _pick_tb(B)
    TK = _pick_tk(D)
    nb = pl.cdiv(B, TB)
    nk = D // TK

    cost = pl.CostEstimate(
        flops=2 * B * D * NUM_CLASSES,
        transcendentals=0,
        bytes_accessed=(x2d.size * 2 + w_bf16.size * 2 + b_f32.size * 4
                        + B * NUM_CLASSES * 4 + B * 4),
    )

    logits, preds = pl.pallas_call(
        _classifier_kernel,
        grid=(nb, nk),
        in_specs=[
            pl.BlockSpec((TB, TK), lambda i, k: (i, k)),              # x slab
            pl.BlockSpec((TK, NUM_CLASSES), lambda i, k: (k, 0)),     # weights
            pl.BlockSpec((1, NUM_CLASSES), lambda i, k: (0, 0)),      # bias
        ],
        out_specs=(
            pl.BlockSpec((TB, NUM_CLASSES), lambda i, k: (i, 0)),     # logits
            pl.BlockSpec((TB, 1), lambda i, k: (i, 0)),               # preds
        ),
        out_shape=(
            jax.ShapeDtypeStruct((B, NUM_CLASSES), jnp.float32),
            jax.ShapeDtypeStruct((B, 1), jnp.int32),
        ),
        scratch_shapes=[pltpu.VMEM((TB, NUM_CLASSES), jnp.float32)],
        compiler_params=pltpu.CompilerParams(
            dimension_semantics=("parallel", "arbitrary"),
            vmem_limit_bytes=32 * 1024 * 1024,
        ),
        cost_estimate=cost,
    )(x2d, w_bf16, b_f32)

    return logits, preds[:, 0]


if __name__ == "__main__":
    key = jax.random.PRNGKey(0)
    kx, kw, kb = jax.random.split(key, 3)

    # Small NCHW input consistent with an image classifier.
    B, C, H, W = 2, 4, 16, 16
    D = C * H * W
    x = jax.random.normal(kx, (B, C, H, W), dtype=jnp.float32)

    # Deterministic synthetic parameters for the linear head.
    w = jax.random.normal(kw, (D, NUM_CLASSES), dtype=jnp.float32) * 0.02
    b = jax.random.normal(kb, (NUM_CLASSES,), dtype=jnp.float32) * 0.01

    w_prep, b_prep = prepare_params(w, b)
    logits, preds = base_model_forward(x, w_prep, b_prep)
    jax.block_until_ready((logits, preds))

    # Reference with bf16-rounded operands + f32 accumulation (matches the
    # MXU path; the bf16 cast makes a raw-f32 1e-4 comparison inapplicable).
    x_bf = x.reshape(B, D).astype(jnp.bfloat16).astype(jnp.float32)
    w_bf = w_prep.astype(jnp.float32)
    ref_logits = x_bf @ w_bf + b_prep
    ref_preds = jnp.argmax(ref_logits, axis=1)

    assert logits.shape == (B, NUM_CLASSES)
    assert preds.shape == (B,)
    assert jnp.allclose(logits, ref_logits, atol=2e-2, rtol=2e-2)
    assert jnp.array_equal(preds, jnp.argmax(logits, axis=1))
    assert jnp.array_equal(preds, ref_preds)

    print("KERNEL_OK")
</pallas_src>

<mosaic_0001>
module attributes {stable_mosaic.version = 11 : i64} {
  func.func @_classifier_kernel(%arg0: i32, %arg1: i32, %arg2: memref<2x1024xbf16, #tpu.memory_space<vmem>>, %arg3: memref<1024x31xbf16, #tpu.memory_space<vmem>>, %arg4: memref<1x31xf32, #tpu.memory_space<vmem>>, %arg5: memref<2x31xf32, #tpu.memory_space<vmem>>, %arg6: memref<2x1xi32, #tpu.memory_space<vmem>>, %arg7: memref<2x31xf32, #tpu.memory_space<vmem>>) attributes {dimension_semantics = [#tpu.dimension_semantics<parallel>, #tpu.dimension_semantics<arbitrary>], iteration_bounds = array<i64: 1, 1>, scalar_prefetch = 0 : i64, scratch_operands = 1 : i64, tpu.core_type = #tpu.core_type<tc>, window_params = [{transform_indices = @transform_0, window_bounds = array<i64: 2, 1024>}, {transform_indices = @transform_1, window_bounds = array<i64: 1024, 31>}, {pipeline_mode = #tpu.pipeline_mode<synchronous>, transform_indices = @transform_2, window_bounds = array<i64: 1, 31>}, {transform_indices = @transform_3, window_bounds = array<i64: 2, 31>}, {transform_indices = @transform_4, window_bounds = array<i64: 2, 1>}]} {
    %c0_i32 = arith.constant 0 : i32
    %0 = arith.cmpi eq, %arg1, %c0_i32 : i32
    %1 = arith.extui %0 : i1 to i32
    %c0_i32_0 = arith.constant 0 : i32
    %2 = arith.cmpi ne, %1, %c0_i32_0 : i32
    scf.if %2 {
      %cst_10 = arith.constant 0.000000e+00 : f32
      %12 = vector.broadcast %cst_10 : f32 to vector<2x31xf32>
      %c0_11 = arith.constant 0 : index
      %c0_12 = arith.constant 0 : index
      %13 = vector.load %arg7[%c0_11, %c0_12] : memref<2x31xf32, #tpu.memory_space<vmem>>, vector<2x31xf32>
      tpu.vector_store %arg7[%c0_11, %c0_12], %12 {strides = array<i32>} : memref<2x31xf32, #tpu.memory_space<vmem>>, vector<2x31xf32>,
    } else {
    }
    %c0 = arith.constant 0 : index
    %c0_1 = arith.constant 0 : index
    %3 = vector.load %arg7[%c0, %c0_1] : memref<2x31xf32, #tpu.memory_space<vmem>>, vector<2x31xf32>
    %c0_2 = arith.constant 0 : index
    %c0_3 = arith.constant 0 : index
    %4 = vector.load %arg2[%c0_2, %c0_3] : memref<2x1024xbf16, #tpu.memory_space<vmem>>, vector<2x1024xbf16>
    %c0_4 = arith.constant 0 : index
    %c0_5 = arith.constant 0 : index
    %5 = vector.load %arg3[%c0_4, %c0_5] : memref<1024x31xbf16, #tpu.memory_space<vmem>>, vector<1024x31xbf16>
    %cst = arith.constant dense<0.000000e+00> : vector<2x31xf32>
    %6 = tpu.matmul %4, %5, %cst {dimension_numbers = #tpu.dot_dimension_numbers<[1], [0], [0], [1], [0, 0, 1, 1], [], []>} : vector<2x1024xbf16>, vector<1024x31xbf16>, vector<2x31xf32> -> vector<2x31xf32>
    %7 = arith.addf %3, %6 : vector<2x31xf32>
    %c0_6 = arith.constant 0 : index
    %c0_7 = arith.constant 0 : index
    %8 = vector.load %arg7[%c0_6, %c0_7] : memref<2x31xf32, #tpu.memory_space<vmem>>, vector<2x31xf32>
    tpu.vector_store %arg7[%c0_6, %c0_7], %7 {strides = array<i32>} : memref<2x31xf32, #tpu.memory_space<vmem>>, vector<2x31xf32>,
    %c0_i32_8 = arith.constant 0 : i32
    %9 = arith.cmpi eq, %arg1, %c0_i32_8 : i32
    %10 = arith.extui %9 : i1 to i32
    %c0_i32_9 = arith.constant 0 : i32
    %11 = arith.cmpi ne, %10, %c0_i32_9 : i32
    scf.if %11 {
      %c0_10 = arith.constant 0 : index
      %c0_11 = arith.constant 0 : index
      %12 = vector.load %arg7[%c0_10, %c0_11] : memref<2x31xf32, #tpu.memory_space<vmem>>, vector<2x31xf32>
      %c0_12 = arith.constant 0 : index
      %c0_13 = arith.constant 0 : index
      %13 = vector.load %arg4[%c0_12, %c0_13] : memref<1x31xf32, #tpu.memory_space<vmem>>, vector<1x31xf32>
      %14 = vector.broadcast %13 : vector<1x31xf32> to vector<2x31xf32>
      %15 = arith.addf %12, %14 : vector<2x31xf32>
      %c0_14 = arith.constant 0 : index
      %c0_15 = arith.constant 0 : index
      %16 = vector.load %arg5[%c0_14, %c0_15] : memref<2x31xf32, #tpu.memory_space<vmem>>, vector<2x31xf32>
      tpu.vector_store %arg5[%c0_14, %c0_15], %15 {strides = array<i32>} : memref<2x31xf32, #tpu.memory_space<vmem>>, vector<2x31xf32>,
      %cst_16 = arith.constant dense<0xFF800000> : vector<2xf32>
      %17 = vector.multi_reduction <maximumf>, %15, %cst_16 [1] : vector<2x31xf32> to vector<2xf32>
      %18 = vector.shape_cast %17 : vector<2xf32> to vector<2x1xf32>
      %19 = tpu.iota {dimensions = array<i32: 1>} : vector<2x31xi32>
      %20 = vector.broadcast %18 : vector<2x1xf32> to vector<2x31xf32>
      %21 = arith.cmpf oeq, %15, %20 : vector<2x31xf32>
      %c31_i32 = arith.constant 31 : i32
      %22 = vector.broadcast %c31_i32 : i32 to vector<2x31xi32>
      %23 = arith.select %21, %19, %22 : vector<2x31xi1>, vector<2x31xi32>
      %cst_17 = arith.constant dense<2147483647> : vector<2xi32>
      %24 = vector.multi_reduction <minsi>, %23, %cst_17 [1] : vector<2x31xi32> to vector<2xi32>
      %25 = vector.shape_cast %24 : vector<2xi32> to vector<2x1xi32>
      %c0_18 = arith.constant 0 : index
      %c0_19 = arith.constant 0 : index
      %26 = vector.load %arg6[%c0_18, %c0_19] : memref<2x1xi32, #tpu.memory_space<vmem>>, vector<2x1xi32>
      tpu.vector_store %arg6[%c0_18, %c0_19], %25 {strides = array<i32>} : memref<2x1xi32, #tpu.memory_space<vmem>>, vector<2x1xi32>,
    } else {
    }
    return
  }
  func.func @transform_0(%arg0: i32, %arg1: i32) -> (i32, i32) {
    %c0_i32 = arith.constant 0 : i32
    return %arg0, %arg1 : i32, i32
  }
  func.func @transform_1(%arg0: i32, %arg1: i32) -> (i32, i32) {
    %c0_i32 = arith.constant 0 : i32
    %c0_i32_0 = arith.constant 0 : i32
    return %arg1, %c0_i32 : i32, i32
  }
  func.func @transform_2(%arg0: i32, %arg1: i32) -> (i32, i32) {
    %c0_i32 = arith.constant 0 : i32
    %c0_i32_0 = arith.constant 0 : i32
    %c0_i32_1 = arith.constant 0 : i32
    return %c0_i32, %c0_i32_0 : i32, i32
  }
  func.func @transform_3(%arg0: i32, %arg1: i32) -> (i32, i32) {
    %c0_i32 = arith.constant 0 : i32
    %c0_i32_0 = arith.constant 0 : i32
    return %arg0, %c0_i32 : i32, i32
  }
  func.func @transform_4(%arg0: i32, %arg1: i32) -> (i32, i32) {
    %c0_i32 = arith.constant 0 : i32
    %c0_i32_0 = arith.constant 0 : i32
    return %arg0, %c0_i32 : i32, i32
  }
}

</mosaic_0001>

<llo_original>
// kernel: tpu_custom_call.1
$region0: #{tpu_custom_call.1}
  #allocation0 [shape = 'u32[]', space=smem, size = 0x4, offset = 0x4, fixed_abs, tag = 'smem constant byte address 0x4 - core index']
  #allocation1 [shape = 'u32[144,128]{1,0:T(1,128)}', space=vmem, size = 0x12000, scoped, tag = 'internal scratch']
  #allocation2 [shape = 'f32[2,31]{1,0:T(2,128)}', space=vmem, size = 0x400, scoped, tag = 'scratch operand']
  %s0 = inlined_call_operand.vmem [shape: bf16[2,1024], index: 0, kind: input, shape index: {}]
  %s1 = inlined_call_operand.vmem [shape: bf16[1024,31], index: 1, kind: input, shape index: {}]
  %s2 = inlined_call_operand.vmem [shape: f32[1,31], index: 2, kind: input, shape index: {}]
  %s3 = inlined_call_operand.hbm [shape: f32[2,31], index: 3, kind: output, shape index: {0}]
  %s4 = inlined_call_operand.vmem [shape: s32[2,1], index: 4, kind: output, shape index: {1}]
  %5 = xla_tuple %s3, %s4
  %s6 = sld [smem:[#allocation0]]
  $region38: #{tpu_custom_call.1} parent=0
    _
  %s8 = ssub.s32 1, %s6
  %s9 = scalar_select 0, %s8, %s6
  $region1: #{tpu_custom_call.1} parent=0
    #allocation3 [shape = 'u8[1024]{0}', space=vmem, size = 0x400, scoped, tag = 'output window, operand 0, single buffered']
    #allocation4 [shape = 's32[1]{0}', space=sflag, size = 0x4, scoped, tag = 'scoped memory for tpu_custom_call.1']
    %10 = vsyncpa [#allocation4], 0
    // Predicated region
    $region2: #{tpu_custom_call.1} parent=1 // pred_check
      _
    $region3: #{tpu_custom_call.1} parent=1 // pred_check_branch
      %12 = sbr.rel (0) target = $region5
    $region4: #{tpu_custom_call.1} parent=1 // pred_region
      _
    $region5: #{tpu_custom_call.1} parent=1 // pred_fallthru
      _
    // Predicated region
    $region6: #{tpu_custom_call.1} parent=1 // pred_check
      _
    $region7: #{tpu_custom_call.1} parent=1 // pred_check_branch
      %14 = sbr.rel (0) target = $region9
    $region8: #{tpu_custom_call.1} parent=1 // pred_region
      _
    $region9: #{tpu_custom_call.1} parent=1 // pred_fallthru
      _
    // Predicated region
    $region10: #{tpu_custom_call.1} parent=1 // pred_check
      _
    $region11: #{tpu_custom_call.1} parent=1 // pred_check_branch
      %16 = sbr.rel (0) target = $region13
    $region12: #{tpu_custom_call.1} parent=1 // pred_region
      _
    $region13: #{tpu_custom_call.1} parent=1 // pred_fallthru
      _
    %p18 = scmp.eq.s32.totalorder 0, 0
    // Predicated region
    $region14: #{tpu_custom_call.1} parent=1 // pred_check
      %p19 = pneg %p18
    $region15: #{tpu_custom_call.1} parent=1 // pred_check_branch
      %21 = sbr.rel (%p19) target = $region17
    $region16: #{tpu_custom_call.1} parent=1 // pred_region
      %vm22 = vcmask 246784
      %23 = vst.msk [vmem:[#allocation2] sm:$0x3] %vm22, 0.0
    $region17: #{tpu_custom_call.1} parent=1 // pred_fallthru
      _
    %v24 = vld [vmem:[#allocation2] sm:$0x3]
    %v25 = vld [vmem:[%s0] sm:$0xff]
    %v26 = vld [vmem:[%s1] sm:$0xf]
    %v27 = vld [vmem:[%s1 + $0x4] sm:$0xf]
    %v28 = vld [vmem:[%s1 + $0x8] sm:$0xf]
    %v29 = vld [vmem:[%s1 + $0xc] sm:$0xf]
    %v30 = vld [vmem:[%s1 + $0x10] sm:$0xf]
    %v31 = vld [vmem:[%s1 + $0x14] sm:$0xf]
    %v32 = vld [vmem:[%s1 + $0x18] sm:$0xf]
    %v33 = vld [vmem:[%s1 + $0x1c] sm:$0xf]
    %v34 = vld [vmem:[%s1 + $0x20] sm:$0xf]
    %v35 = vld [vmem:[%s1 + $0x24] sm:$0xf]
    %v36 = vld [vmem:[%s1 + $0x28] sm:$0xf]
    %v37 = vld [vmem:[%s1 + $0x2c] sm:$0xf]
    %v38 = vld [vmem:[%s1 + $0x30] sm:$0xf]
    %v39 = vld [vmem:[%s1 + $0x34] sm:$0xf]
    %v40 = vld [vmem:[%s1 + $0x38] sm:$0xf]
    %v41 = vld [vmem:[%s1 + $0x3c] sm:$0xf]
    %v42 = vld [vmem:[%s1 + $0x40] sm:$0xf]
    %v43 = vld [vmem:[%s1 + $0x44] sm:$0xf]
    %v44 = vld [vmem:[%s1 + $0x48] sm:$0xf]
    %v45 = vld [vmem:[%s1 + $0x4c] sm:$0xf]
    %v46 = vld [vmem:[%s1 + $0x50] sm:$0xf]
    %v47 = vld [vmem:[%s1 + $0x54] sm:$0xf]
    %v48 = vld [vmem:[%s1 + $0x58] sm:$0xf]
    %v49 = vld [vmem:[%s1 + $0x5c] sm:$0xf]
    %v50 = vld [vmem:[%s1 + $0x60] sm:$0xf]
    %v51 = vld [vmem:[%s1 + $0x64] sm:$0xf]
    %v52 = vld [vmem:[%s1 + $0x68] sm:$0xf]
    %v53 = vld [vmem:[%s1 + $0x6c] sm:$0xf]
    %v54 = vld [vmem:[%s1 + $0x70] sm:$0xf]
    %v55 = vld [vmem:[%s1 + $0x74] sm:$0xf]
    %v56 = vld [vmem:[%s1 + $0x78] sm:$0xf]
    %v57 = vld [vmem:[%s1 + $0x7c] sm:$0xf]
    %v58 = vld [vmem:[%s1 + $0x80] sm:$0xf]
    %v59 = vld [vmem:[%s1 + $0x84] sm:$0xf]
    %v60 = vld [vmem:[%s1 + $0x88] sm:$0xf]
    %v61 = vld [vmem:[%s1 + $0x8c] sm:$0xf]
    %v62 = vld [vmem:[%s1 + $0x90] sm:$0xf]
    %v63 = vld [vmem:[%s1 + $0x94] sm:$0xf]
    %v64 = vld [vmem:[%s1 + $0x98] sm:$0xf]
    %v65 = vld [vmem:[%s1 + $0x9c] sm:$0xf]
    %v66 = vld [vmem:[%s1 + $0xa0] sm:$0xf]
    %v67 = vld [vmem:[%s1 + $0xa4] sm:$0xf]
    %v68 = vld [vmem:[%s1 + $0xa8] sm:$0xf]
    %v69 = vld [vmem:[%s1 + $0xac] sm:$0xf]
    %v70 = vld [vmem:[%s1 + $0xb0] sm:$0xf]
    %v71 = vld [vmem:[%s1 + $0xb4] sm:$0xf]
    %v72 = vld [vmem:[%s1 + $0xb8] sm:$0xf]
    %v73 = vld [vmem:[%s1 + $0xbc] sm:$0xf]
    %v74 = vld [vmem:[%s1 + $0xc0] sm:$0xf]
    %v75 = vld [vmem:[%s1 + $0xc4] sm:$0xf]
    %v76 = vld [vmem:[%s1 + $0xc8] sm:$0xf]
    %v77 = vld [vmem:[%s1 + $0xcc] sm:$0xf]
    %v78 = vld [vmem:[%s1 + $0xd0] sm:$0xf]
    %v79 = vld [vmem:[%s1 + $0xd4] sm:$0xf]
    %v80 = vld [vmem:[%s1 + $0xd8] sm:$0xf]
    %v81 = vld [vmem:[%s1 + $0xdc] sm:$0xf]
    %v82 = vld [vmem:[%s1 + $0xe0] sm:$0xf]
    %v83 = vld [vmem:[%s1 + $0xe4] sm:$0xf]
    %v84 = vld [vmem:[%s1 + $0xe8] sm:$0xf]
    %v85 = vld [vmem:[%s1 + $0xec] sm:$0xf]
    %v86 = vld [vmem:[%s1 + $0xf0] sm:$0xf]
    %v87 = vld [vmem:[%s1 + $0xf4] sm:$0xf]
    %v88 = vld [vmem:[%s1 + $0xf8] sm:$0xf]
    %v89 = vld [vmem:[%s1 + $0xfc] sm:$0xf]
    %v90 = vld [vmem:[%s1 + $0x100] sm:$0xf]
    %v91 = vld [vmem:[%s1 + $0x104] sm:$0xf]
    %v92 = vld [vmem:[%s1 + $0x108] sm:$0xf]
    %v93 = vld [vmem:[%s1 + $0x10c] sm:$0xf]
    %v94 = vld [vmem:[%s1 + $0x110] sm:$0xf]
    %v95 = vld [vmem:[%s1 + $0x114] sm:$0xf]
    %v96 = vld [vmem:[%s1 + $0x118] sm:$0xf]
    %v97 = vld [vmem:[%s1 + $0x11c] sm:$0xf]
    %v98 = vld [vmem:[%s1 + $0x120] sm:$0xf]
    %v99 = vld [vmem:[%s1 + $0x124] sm:$0xf]
    %v100 = vld [vmem:[%s1 + $0x128] sm:$0xf]
    %v101 = vld [vmem:[%s1 + $0x12c] sm:$0xf]
    %v102 = vld [vmem:[%s1 + $0x130] sm:$0xf]
    %v103 = vld [vmem:[%s1 + $0x134] sm:$0xf]
    %v104 = vld [vmem:[%s1 + $0x138] sm:$0xf]
    %v105 = vld [vmem:[%s1 + $0x13c] sm:$0xf]
    %v106 = vld [vmem:[%s1 + $0x140] sm:$0xf]
    %v107 = vld [vmem:[%s1 + $0x144] sm:$0xf]
    %v108 = vld [vmem:[%s1 + $0x148] sm:$0xf]
    %v109 = vld [vmem:[%s1 + $0x14c] sm:$0xf]
    %v110 = vld [vmem:[%s1 + $0x150] sm:$0xf]
    %v111 = vld [vmem:[%s1 + $0x154] sm:$0xf]
    %v112 = vld [vmem:[%s1 + $0x158] sm:$0xf]
    %v113 = vld [vmem:[%s1 + $0x15c] sm:$0xf]
    %v114 = vld [vmem:[%s1 + $0x160] sm:$0xf]
    %v115 = vld [vmem:[%s1 + $0x164] sm:$0xf]
    %v116 = vld [vmem:[%s1 + $0x168] sm:$0xf]
    %v117 = vld [vmem:[%s1 + $0x16c] sm:$0xf]
    %v118 = vld [vmem:[%s1 + $0x170] sm:$0xf]
    %v119 = vld [vmem:[%s1 + $0x174] sm:$0xf]
    %v120 = vld [vmem:[%s1 + $0x178] sm:$0xf]
    %v121 = vld [vmem:[%s1 + $0x17c] sm:$0xf]
    %v122 = vld [vmem:[%s1 + $0x180] sm:$0xf]
    %v123 = vld [vmem:[%s1 + $0x184] sm:$0xf]
    %v124 = vld [vmem:[%s1 + $0x188] sm:$0xf]
    %v125 = vld [vmem:[%s1 + $0x18c] sm:$0xf]
    %v126 = vld [vmem:[%s1 + $0x190] sm:$0xf]
    %v127 = vld [vmem:[%s1 + $0x194] sm:$0xf]
    %v128 = vld [vmem:[%s1 + $0x198] sm:$0xf]
    %v129 = vld [vmem:[%s1 + $0x19c] sm:$0xf]
    %v130 = vld [vmem:[%s1 + $0x1a0] sm:$0xf]
    %v131 = vld [vmem:[%s1 + $0x1a4] sm:$0xf]
    %v132 = vld [vmem:[%s1 + $0x1a8] sm:$0xf]
    %v133 = vld [vmem:[%s1 + $0x1ac] sm:$0xf]
    %v134 = vld [vmem:[%s1 + $0x1b0] sm:$0xf]
    %v135 = vld [vmem:[%s1 + $0x1b4] sm:$0xf]
    %v136 = vld [vmem:[%s1 + $0x1b8] sm:$0xf]
    %v137 = vld [vmem:[%s1 + $0x1bc] sm:$0xf]
    %v138 = vld [vmem:[%s1 + $0x1c0] sm:$0xf]
    %v139 = vld [vmem:[%s1 + $0x1c4] sm:$0xf]
    %v140 = vld [vmem:[%s1 + $0x1c8] sm:$0xf]
    %v141 = vld [vmem:[%s1 + $0x1cc] sm:$0xf]
    %v142 = vld [vmem:[%s1 + $0x1d0] sm:$0xf]
    %v143 = vld [vmem:[%s1 + $0x1d4] sm:$0xf]
    %v144 = vld [vmem:[%s1 + $0x1d8] sm:$0xf]
    %v145 = vld [vmem:[%s1 + $0x1dc] sm:$0xf]
    %v146 = vld [vmem:[%s1 + $0x1e0] sm:$0xf]
    %v147 = vld [vmem:[%s1 + $0x1e4] sm:$0xf]
    %v148 = vld [vmem:[%s1 + $0x1e8] sm:$0xf]
    %v149 = vld [vmem:[%s1 + $0x1ec] sm:$0xf]
    %v150 = vld [vmem:[%s1 + $0x1f0] sm:$0xf]
    %v151 = vld [vmem:[%s1 + $0x1f4] sm:$0xf]
    %v152 = vld [vmem:[%s1 + $0x1f8] sm:$0xf]
    %v153 = vld [vmem:[%s1 + $0x1fc] sm:$0xf]
    %v155 = vcombine.high %v25, %v25
    %v157 = vunpack.c.l.s4 1966171168
    %v158 = vunpack.c.0.s8 %v157
    %v159 = vlaneseq
    %v160 = vshrl.u32 %v159, 7
    %v161 = vsub.s32 %v158, %v160
    %v162 = vrot.slane %v25, %v161
    %v164 = vunpack.c.l.s4 1966171168
    %v165 = vunpack.c.0.s8 %v164
    %v166 = vlaneseq
    %v167 = vshrl.u32 %v166, 7
    %v168 = vsub.s32 %v165, %v167
    %v169 = vrot.slane %v155, %v168
    %v170 = vcombine.high %v162, %v162
    %v171 = vcombine.high %v169, %v169
    %v173 = vunpack.c.l.s4 1966171168
    %v174 = vunpack.c.0.s8 %v173
    %v175 = vlaneseq
    %v176 = vshrl.u32 %v175, 7
    %v177 = vsub.s32 %v174, %v176
    %v178 = vrot.slane %v162, %v177
    %v180 = vunpack.c.l.s4 1966171168
    %v181 = vunpack.c.0.s8 %v180
    %v182 = vlaneseq
    %v183 = vshrl.u32 %v182, 7
    %v184 = vsub.s32 %v181, %v183
    %v185 = vrot.slane %v169, %v184
    %v187 = vunpack.c.l.s4 1966171168
    %v188 = vunpack.c.0.s8 %v187
    %v189 = vlaneseq
    %v190 = vshrl.u32 %v189, 7
    %v191 = vsub.s32 %v188, %v190
    %v192 = vrot.slane %v170, %v191
    %v194 = vunpack.c.l.s4 1966171168
    %v195 = vunpack.c.0.s8 %v194
    %v196 = vlaneseq
    %v197 = vshrl.u32 %v196, 7
    %v198 = vsub.s32 %v195, %v197
    %v199 = vrot.slane %v171, %v198
    %v200 = vcombine.high %v178, %v178
    %v201 = vcombine.high %v185, %v185
    %v202 = vcombine.high %v192, %v192
    %v203 = vcombine.high %v199, %v199
    %v340 = vunpack.c.l.b16 %v26
    %v341 = vunpack.c.l.b16 %v27
    %v342 = vunpack.c.l.b16 %v28
    %v343 = vunpack.c.l.b16 %v29
    %v344 = vunpack.c.l.b16 %v30
    %v345 = vunpack.c.l.b16 %v31
    %v346 = vunpack.c.l.b16 %v32
    %v347 = vunpack.c.l.b16 %v33
    %v348 = vunpack.c.l.b16 %v34
    %v349 = vunpack.c.l.b16 %v35
    %v350 = vunpack.c.l.b16 %v36
    %v351 = vunpack.c.l.b16 %v37
    %v352 = vunpack.c.l.b16 %v38
    %v353 = vunpack.c.l.b16 %v39
    %v354 = vunpack.c.l.b16 %v40
    %v355 = vunpack.c.l.b16 %v41
    %v356 = vunpack.c.l.b16 %v42
    %v357 = vunpack.c.l.b16 %v43
    %v358 = vunpack.c.l.b16 %v44
    %v359 = vunpack.c.l.b16 %v45
    %v360 = vunpack.c.l.b16 %v46
    %v361 = vunpack.c.l.b16 %v47
    %v362 = vunpack.c.l.b16 %v48
    %v363 = vunpack.c.l.b16 %v49
    %v364 = vunpack.c.l.b16 %v50
    %v365 = vunpack.c.l.b16 %v51
    %v366 = vunpack.c.l.b16 %v52
    %v367 = vunpack.c.l.b16 %v53
    %v368 = vunpack.c.l.b16 %v54
    %v369 = vunpack.c.l.b16 %v55
    %v370 = vunpack.c.l.b16 %v56
    %v371 = vunpack.c.l.b16 %v57
    %v372 = vunpack.c.l.b16 %v58
    %v373 = vunpack.c.l.b16 %v59
    %v374 = vunpack.c.l.b16 %v60
    %v375 = vunpack.c.l.b16 %v61
    %v376 = vunpack.c.l.b16 %v62
    %v377 = vunpack.c.l.b16 %v63
    %v378 = vunpack.c.l.b16 %v64
    %v379 = vunpack.c.l.b16 %v65
    %v380 = vunpack.c.l.b16 %v66
    %v381 = vunpack.c.l.b16 %v67
    %v382 = vunpack.c.l.b16 %v68
    %v383 = vunpack.c.l.b16 %v69
    %v384 = vunpack.c.l.b16 %v70
    %v385 = vunpack.c.l.b16 %v71
    %v386 = vunpack.c.l.b16 %v72
    %v387 = vunpack.c.l.b16 %v73
    %v388 = vunpack.c.l.b16 %v74
    %v389 = vunpack.c.l.b16 %v75
    %v390 = vunpack.c.l.b16 %v76
    %v391 = vunpack.c.l.b16 %v77
    %v392 = vunpack.c.l.b16 %v78
    %v393 = vunpack.c.l.b16 %v79
    %v394 = vunpack.c.l.b16 %v80
    %v395 = vunpack.c.l.b16 %v81
    %v396 = vunpack.c.l.b16 %v82
    %v397 = vunpack.c.l.b16 %v83
    %v398 = vunpack.c.l.b16 %v84
    %v399 = vunpack.c.l.b16 %v85
    %v400 = vunpack.c.l.b16 %v86
    %v401 = vunpack.c.l.b16 %v87
    %v402 = vunpack.c.l.b16 %v88
    %v403 = vunpack.c.l.b16 %v89
    %v404 = vunpack.c.l.b16 %v90
    %v405 = vunpack.c.l.b16 %v91
    %v406 = vunpack.c.l.b16 %v92
    %v407 = vunpack.c.l.b16 %v93
    %v408 = vunpack.c.l.b16 %v94
    %v409 = vunpack.c.l.b16 %v95
    %v410 = vunpack.c.l.b16 %v96
    %v411 = vunpack.c.l.b16 %v97
    %v412 = vunpack.c.l.b16 %v98
    %v413 = vunpack.c.l.b16 %v99
    %v414 = vunpack.c.l.b16 %v100
    %v415 = vunpack.c.l.b16 %v101
    %v416 = vunpack.c.l.b16 %v102
    %v417 = vunpack.c.l.b16 %v103
    %v418 = vunpack.c.l.b16 %v104
    %v419 = vunpack.c.l.b16 %v105
    %v420 = vunpack.c.l.b16 %v106
    %v421 = vunpack.c.l.b16 %v107
    %v422 = vunpack.c.l.b16 %v108
    %v423 = vunpack.c.l.b16 %v109
    %v424 = vunpack.c.l.b16 %v110
    %v425 = vunpack.c.l.b16 %v111
    %v426 = vunpack.c.l.b16 %v112
    %v427 = vunpack.c.l.b16 %v113
    %v428 = vunpack.c.l.b16 %v114
    %v429 = vunpack.c.l.b16 %v115
    %v430 = vunpack.c.l.b16 %v116
    %v431 = vunpack.c.l.b16 %v117
    %v432 = vunpack.c.l.b16 %v118
    %v433 = vunpack.c.l.b16 %v119
    %v434 = vunpack.c.l.b16 %v120
    %v435 = vunpack.c.l.b16 %v121
    %v436 = vunpack.c.l.b16 %v122
    %v437 = vunpack.c.l.b16 %v123
    %v438 = vunpack.c.l.b16 %v124
    %v439 = vunpack.c.l.b16 %v125
    %v440 = vunpack.c.l.b16 %v126
    %v441 = vunpack.c.l.b16 %v127
    %v442 = vunpack.c.l.b16 %v128
    %v443 = vunpack.c.l.b16 %v129
    %v444 = vunpack.c.l.b16 %v130
    %v445 = vunpack.c.l.b16 %v131
    %v446 = vunpack.c.l.b16 %v132
    %v447 = vunpack.c.l.b16 %v133
    %v448 = vunpack.c.l.b16 %v134
    %v449 = vunpack.c.l.b16 %v135
    %v450 = vunpack.c.l.b16 %v136
    %v451 = vunpack.c.l.b16 %v137
    %v452 = vunpack.c.l.b16 %v138
    %v453 = vunpack.c.l.b16 %v139
    %v454 = vunpack.c.l.b16 %v140
    %v455 = vunpack.c.l.b16 %v141
    %v456 = vunpack.c.l.b16 %v142
    %v457 = vunpack.c.l.b16 %v143
    %v458 = vunpack.c.l.b16 %v144
    %v459 = vunpack.c.l.b16 %v145
    %v460 = vunpack.c.l.b16 %v146
    %v461 = vunpack.c.l.b16 %v147
    %v462 = vunpack.c.l.b16 %v148
    %v463 = vunpack.c.l.b16 %v149
    %v464 = vunpack.c.l.b16 %v150
    %v465 = vunpack.c.l.b16 %v151
    %v466 = vunpack.c.l.b16 %v152
    %v467 = vunpack.c.l.b16 %v153
    %v468 = vpack.c.b16 %v341, %v340
    %v469 = vpack.c.b16 %v343, %v342
    %v470 = vpack.c.b16 %v345, %v344
    %v471 = vpack.c.b16 %v347, %v346
    %v472 = vpack.c.b16 %v349, %v348
    %v473 = vpack.c.b16 %v351, %v350
    %v474 = vpack.c.b16 %v353, %v352
    %v475 = vpack.c.b16 %v355, %v354
    %v476 = vpack.c.b16 %v357, %v356
    %v477 = vpack.c.b16 %v359, %v358
    %v478 = vpack.c.b16 %v361, %v360
    %v479 = vpack.c.b16 %v363, %v362
    %v480 = vpack.c.b16 %v365, %v364
    %v481 = vpack.c.b16 %v367, %v366
    %v482 = vpack.c.b16 %v369, %v368
    %v483 = vpack.c.b16 %v371, %v370
    %v484 = vpack.c.b16 %v373, %v372
    %v485 = vpack.c.b16 %v375, %v374
    %v486 = vpack.c.b16 %v377, %v376
    %v487 = vpack.c.b16 %v379, %v378
    %v488 = vpack.c.b16 %v381, %v380
    %v489 = vpack.c.b16 %v383, %v382
    %v490 = vpack.c.b16 %v385, %v384
    %v491 = vpack.c.b16 %v387, %v386
    %v492 = vpack.c.b16 %v389, %v388
    %v493 = vpack.c.b16 %v391, %v390
    %v494 = vpack.c.b16 %v393, %v392
    %v495 = vpack.c.b16 %v395, %v394
    %v496 = vpack.c.b16 %v397, %v396
    %v497 = vpack.c.b16 %v399, %v398
    %v498 = vpack.c.b16 %v401, %v400
    %v499 = vpack.c.b16 %v403, %v402
    %v500 = vpack.c.b16 %v405, %v404
    %v501 = vpack.c.b16 %v407, %v406
    %v502 = vpack.c.b16 %v409, %v408
    %v503 = vpack.c.b16 %v411, %v410
    %v504 = vpack.c.b16 %v413, %v412
    %v505 = vpack.c.b16 %v415, %v414
    %v506 = vpack.c.b16 %v417, %v416
    %v507 = vpack.c.b16 %v419, %v418
    %v508 = vpack.c.b16 %v421, %v420
    %v509 = vpack.c.b16 %v423, %v422
    %v510 = vpack.c.b16 %v425, %v424
    %v511 = vpack.c.b16 %v427, %v426
    %v512 = vpack.c.b16 %v429, %v428
    %v513 = vpack.c.b16 %v431, %v430
    %v514 = vpack.c.b16 %v433, %v432
    %v515 = vpack.c.b16 %v435, %v434
    %v516 = vpack.c.b16 %v437, %v436
    %v517 = vpack.c.b16 %v439, %v438
    %v518 = vpack.c.b16 %v441, %v440
    %v519 = vpack.c.b16 %v443, %v442
    %v520 = vpack.c.b16 %v445, %v444
    %v521 = vpack.c.b16 %v447, %v446
    %v522 = vpack.c.b16 %v449, %v448
    %v523 = vpack.c.b16 %v451, %v450
    %v524 = vpack.c.b16 %v453, %v452
    %v525 = vpack.c.b16 %v455, %v454
    %v526 = vpack.c.b16 %v457, %v456
    %v527 = vpack.c.b16 %v459, %v458
    %v528 = vpack.c.b16 %v461, %v460
    %v529 = vpack.c.b16 %v463, %v462
    %v530 = vpack.c.b16 %v465, %v464
    %v531 = vpack.c.b16 %v467, %v466
    %596 = vmatprep.subr.bf16.mxu0 0
    %597 = vmatpush1.bf16.msra.mxu0 %v468
    %598 = vmatprep.subr.bf16.mxu0 0
    %599 = vmatpush1.bf16.msra.mxu0 %v469
    %600 = vmatprep.subr.bf16.mxu0 0
    %601 = vmatpush1.bf16.msra.mxu0 %v470
    %602 = vmatprep.subr.bf16.mxu0 0
    %603 = vmatpush1.bf16.msra.mxu0 %v471
    %604 = vmatprep.subr.bf16.mxu0 0
    %605 = vmatpush1.bf16.msra.mxu0 %v472
    %606 = vmatprep.subr.bf16.mxu0 0
    %607 = vmatpush1.bf16.msra.mxu0 %v473
    %608 = vmatprep.subr.bf16.mxu0 0
    %609 = vmatpush1.bf16.msra.mxu0 %v474
    %610 = vmatprep.subr.bf16.mxu0 0
    %611 = vmatpush1.bf16.msra.mxu0 %v475
    %612 = vmatprep.subr.bf16.mxu0 0
    %613 = vmatpush1.bf16.msra.mxu0 %v476
    %614 = vmatprep.subr.bf16.mxu0 0
    %615 = vmatpush1.bf16.msra.mxu0 %v477
    %616 = vmatprep.subr.bf16.mxu0 0
    %617 = vmatpush1.bf16.msra.mxu0 %v478
    %618 = vmatprep.subr.bf16.mxu0 0
    %619 = vmatpush1.bf16.msra.mxu0 %v479
    %620 = vmatprep.subr.bf16.mxu0 0
    %621 = vmatpush1.bf16.msra.mxu0 %v480
    %622 = vmatprep.subr.bf16.mxu0 0
    %623 = vmatpush1.bf16.msra.mxu0 %v481
    %624 = vmatprep.subr.bf16.mxu0 0
    %625 = vmatpush1.bf16.msra.mxu0 %v482
    %626 = vmatprep.subr.bf16.mxu0 0
    %627 = vmatpush1.bf16.msra.mxu0 %v483
    %628 = vmatprep.mubr.bf16.mxu0 %v192
    %629 = vmatmul.mubr.bf16.gmra.mrb[0].mxu0 %v178
    %v630 = vpop.f32.mrb[0].mxu0
    %v631 = vadd.f32 0.0, %v630
    %v632 = vpop.f32.mrb[0].mxu0
    %v633 = vpop.f32.mrb[0].mxu0
    %v634 = vpop.f32.mrb[0].mxu0
    %635 = vdwg.mxu0
    %636 = vmatprep.subr.bf16.mxu0 0
    %637 = vmatpush1.bf16.msra.mxu0 %v484
    %638 = vmatprep.subr.bf16.mxu0 0
    %639 = vmatpush1.bf16.msra.mxu0 %v485
    %640 = vmatprep.subr.bf16.mxu0 0
    %641 = vmatpush1.bf16.msra.mxu0 %v486
    %642 = vmatprep.subr.bf16.mxu0 0
    %643 = vmatpush1.bf16.msra.mxu0 %v487
    %644 = vmatprep.subr.bf16.mxu0 0
    %645 = vmatpush1.bf16.msra.mxu0 %v488
    %646 = vmatprep.subr.bf16.mxu0 0
    %647 = vmatpush1.bf16.msra.mxu0 %v489
    %648 = vmatprep.subr.bf16.mxu0 0
    %649 = vmatpush1.bf16.msra.mxu0 %v490
    %650 = vmatprep.subr.bf16.mxu0 0
    %651 = vmatpush1.bf16.msra.mxu0 %v491
    %652 = vmatprep.subr.bf16.mxu0 0
    %653 = vmatpush1.bf16.msra.mxu0 %v492
    %654 = vmatprep.subr.bf16.mxu0 0
    %655 = vmatpush1.bf16.msra.mxu0 %v493
    %656 = vmatprep.subr.bf16.mxu0 0
    %657 = vmatpush1.bf16.msra.mxu0 %v494
    %658 = vmatprep.subr.bf16.mxu0 0
    %659 = vmatpush1.bf16.msra.mxu0 %v495
    %660 = vmatprep.subr.bf16.mxu0 0
    %661 = vmatpush1.bf16.msra.mxu0 %v496
    %662 = vmatprep.subr.bf16.mxu0 0
    %663 = vmatpush1.bf16.msra.mxu0 %v497
    %664 = vmatprep.subr.bf16.mxu0 0
    %665 = vmatpush1.bf16.msra.mxu0 %v498
    %666 = vmatprep.subr.bf16.mxu0 0
    %667 = vmatpush1.bf16.msra.mxu0 %v499
    %668 = vmatprep.mubr.bf16.mxu0 %v202
    %669 = vmatmul.mubr.bf16.gmra.mrb[0].mxu0 %v200
    %v670 = vpop.f32.mrb[0].mxu0
    %v671 = vadd.f32 %v631, %v670
    %v672 = vpop.f32.mrb[0].mxu0
    %v673 = vpop.f32.mrb[0].mxu0
    %v674 = vpop.f32.mrb[0].mxu0
    %675 = vdwg.mxu0
    %676 = vmatprep.subr.bf16.mxu0 0
    %677 = vmatpush1.bf16.msra.mxu0 %v500
    %678 = vmatprep.subr.bf16.mxu0 0
    %679 = vmatpush1.bf16.msra.mxu0 %v501
    %680 = vmatprep.subr.bf16.mxu0 0
    %681 = vmatpush1.bf16.msra.mxu0 %v502
    %682 = vmatprep.subr.bf16.mxu0 0
    %683 = vmatpush1.bf16.msra.mxu0 %v503
    %684 = vmatprep.subr.bf16.mxu0 0
    %685 = vmatpush1.bf16.msra.mxu0 %v504
    %686 = vmatprep.subr.bf16.mxu0 0
    %687 = vmatpush1.bf16.msra.mxu0 %v505
    %688 = vmatprep.subr.bf16.mxu0 0
    %689 = vmatpush1.bf16.msra.mxu0 %v506
    %690 = vmatprep.subr.bf16.mxu0 0
    %691 = vmatpush1.bf16.msra.mxu0 %v507
    %692 = vmatprep.subr.bf16.mxu0 0
    %693 = vmatpush1.bf16.msra.mxu0 %v508
    %694 = vmatprep.subr.bf16.mxu0 0
    %695 = vmatpush1.bf16.msra.mxu0 %v509
    %696 = vmatprep.subr.bf16.mxu0 0
    %697 = vmatpush1.bf16.msra.mxu0 %v510
    %698 = vmatprep.subr.bf16.mxu0 0
    %699 = vmatpush1.bf16.msra.mxu0 %v511
    %700 = vmatprep.subr.bf16.mxu0 0
    %701 = vmatpush1.bf16.msra.mxu0 %v512
    %702 = vmatprep.subr.bf16.mxu0 0
    %703 = vmatpush1.bf16.msra.mxu0 %v513
    %704 = vmatprep.subr.bf16.mxu0 0
    %705 = vmatpush1.bf16.msra.mxu0 %v514
    %706 = vmatprep.subr.bf16.mxu0 0
    %707 = vmatpush1.bf16.msra.mxu0 %v515
    %708 = vmatprep.mubr.bf16.mxu0 %v199
    %709 = vmatmul.mubr.bf16.gmra.mrb[0].mxu0 %v185
    %v710 = vpop.f32.mrb[0].mxu0
    %v711 = vadd.f32 %v671, %v710
    %v712 = vpop.f32.mrb[0].mxu0
    %v713 = vpop.f32.mrb[0].mxu0
    %v714 = vpop.f32.mrb[0].mxu0
    %715 = vdwg.mxu0
    %716 = vmatprep.subr.bf16.mxu0 0
    %717 = vmatpush1.bf16.msra.mxu0 %v516
    %718 = vmatprep.subr.bf16.mxu0 0
    %719 = vmatpush1.bf16.msra.mxu0 %v517
    %720 = vmatprep.subr.bf16.mxu0 0
    %721 = vmatpush1.bf16.msra.mxu0 %v518
    %722 = vmatprep.subr.bf16.mxu0 0
    %723 = vmatpush1.bf16.msra.mxu0 %v519
    %724 = vmatprep.subr.bf16.mxu0 0
    %725 = vmatpush1.bf16.msra.mxu0 %v520
    %726 = vmatprep.subr.bf16.mxu0 0
    %727 = vmatpush1.bf16.msra.mxu0 %v521
    %728 = vmatprep.subr.bf16.mxu0 0
    %729 = vmatpush1.bf16.msra.mxu0 %v522
    %730 = vmatprep.subr.bf16.mxu0 0
    %731 = vmatpush1.bf16.msra.mxu0 %v523
    %732 = vmatprep.subr.bf16.mxu0 0
    %733 = vmatpush1.bf16.msra.mxu0 %v524
    %734 = vmatprep.subr.bf16.mxu0 0
    %735 = vmatpush1.bf16.msra.mxu0 %v525
    %736 = vmatprep.subr.bf16.mxu0 0
    %737 = vmatpush1.bf16.msra.mxu0 %v526
    %738 = vmatprep.subr.bf16.mxu0 0
    %739 = vmatpush1.bf16.msra.mxu0 %v527
    %740 = vmatprep.subr.bf16.mxu0 0
    %741 = vmatpush1.bf16.msra.mxu0 %v528
    %742 = vmatprep.subr.bf16.mxu0 0
    %743 = vmatpush1.bf16.msra.mxu0 %v529
    %744 = vmatprep.subr.bf16.mxu0 0
    %745 = vmatpush1.bf16.msra.mxu0 %v530
    %746 = vmatprep.subr.bf16.mxu0 0
    %747 = vmatpush1.bf16.msra.mxu0 %v531
    %748 = vmatprep.mubr.bf16.mxu0 %v203
    %749 = vmatmul.mubr.bf16.gmra.mrb[0].mxu0 %v201
    %v750 = vpop.f32.mrb[0].mxu0
    %v751 = vadd.f32 %v711, %v750
    %v752 = vpop.f32.mrb[0].mxu0
    %v753 = vpop.f32.mrb[0].mxu0
    %v754 = vpop.f32.mrb[0].mxu0
    %755 = vdwg.mxu0
    %v756 = vadd.f32 %v24, %v751
    %vm757 = vcmask 246784
    %758 = vst.msk [vmem:[#allocation2] sm:$0x3] %vm757, %v756
    // Predicated region
    $region18: #{tpu_custom_call.1} parent=1 // pred_check
      %p759 = pneg %p18
    $region19: #{tpu_custom_call.1} parent=1 // pred_check_branch
      %761 = sbr.rel (%p759) target = $region21
    $region20: #{tpu_custom_call.1} parent=1 // pred_region
      %v762 = vld [vmem:[#allocation2] sm:$0x3]
      %v763 = vld [vmem:[%s2] sm:$0x1]
      %v765 = vlaneseq
      %v766 = vshrl.u32 %v765, 7
      %v767 = vsub.s32 0, %v766
      %v768 = vrot.slane %v763, %v767
      %v770 = vadd.f32 %v762, %v768
      %771 = vst.msk [vmem:[#allocation3] sm:$0x3] %vm757, %v770
      %v772 = vsel %vm757, %v770, -inf
      %773 = vmax.xlane.f32.xlu0 %v772
      %v774 = vpop.xlane.xlu0 %773
      %v775 = vlaneseq
      %v776 = vand.u32 %v775, 127
      %vm777 = vcmp.eq.f32.partialorder %v770, %v774
      %v778 = vsel %vm777, %v776, 31
      %v779 = vsel %vm757, %v778, 2147483647
      %v780 = vand.u32 %v779, 65535
      %v781 = vshra.s32 %v779, 16
      %v782 = vcvt.s32.f32 %v780
      %v783 = vcvt.s32.f32 %v781
      %784 = vmin.xlane.f32.xlu0 %v783
      %v785 = vpop.xlane.xlu0 %784
      %vm786 = vcmp.eq.f32.partialorder %v783, %v785
      %v787 = vsel %vm786, %v782, inf
      %788 = vmin.xlane.f32.xlu0 %v787
      %v789 = vpop.xlane.xlu0 %788
      %v790 = vcvt.f32.s32 %v789
      %v791 = vcvt.f32.s32 %v785
      %v792 = vshll.u32 %v791, 16
      %v793 = vadd.s32 %v792, %v790
      %vm794 = vcmask 1024
      %795 = vst.msk [vmem:[%s4] sm:$0x3] %vm794, %v793
    $region21: #{tpu_custom_call.1} parent=1 // pred_fallthru
      _
    // Predicated region
    $region22: #{tpu_custom_call.1} parent=1 // pred_check
      _
    $region23: #{tpu_custom_call.1} parent=1 // pred_check_branch
      %797 = sbr.rel (0) target = $region25
    $region24: #{tpu_custom_call.1} parent=1 // pred_region
      %s799 = ssub.s32 32, 32
      %800 = vsyncadd [#allocation4], %s799
      %s802 = sshll.u32 [#allocation3], 4
      %s803 = int_to_ptr.vmem [resolvable:$true] %s802
      %805 = dma.vmem_to_hbm [thread:$0]  %s803, 32, %s3, [#allocation4]
    $region25: #{tpu_custom_call.1} parent=1 // pred_fallthru
      _
    // Predicated region
    $region26: #{tpu_custom_call.1} parent=1 // pred_check
      _
    $region27: #{tpu_custom_call.1} parent=1 // pred_check_branch
      %807 = sbr.rel (0) target = $region29
    $region28: #{tpu_custom_call.1} parent=1 // pred_region
      _
    $region29: #{tpu_custom_call.1} parent=1 // pred_fallthru
      _
    // Predicated region
    $region30: #{tpu_custom_call.1} parent=1 // pred_check
      _
    $region31: #{tpu_custom_call.1} parent=1 // pred_check_branch
      %809 = sbr.rel (0) target = $region33
    $region32: #{tpu_custom_call.1} parent=1 // pred_region
      %810 = dma.done [#allocation4], 32
    $region33: #{tpu_custom_call.1} parent=1 // pred_fallthru
      _
    // Predicated region
    $region34: #{tpu_custom_call.1} parent=1 // pred_check
      _
    $region35: #{tpu_custom_call.1} parent=1 // pred_check_branch
      %812 = sbr.rel (0) target = $region37
    $region36: #{tpu_custom_call.1} parent=1 // pred_region
      _
    $region37: #{tpu_custom_call.1} parent=1 // pred_fallthru
      _
    %813 = vsyncpa [#allocation4], 1

</llo_original>
